<compile_context>
chip_gen: v7x
topology: tpu7x:2x2x1
jax: 0.10.0
libtpu: 0.0.40
codegen_flags: <defaults>
</compile_context>

<pallas_src>
from functools import partial

import jax
import jax.numpy as jnp
import numpy as np
from jax.experimental import pallas as pl
from jax.experimental.pallas import tpu as pltpu


def _rope_kernel(seqlen_ref, freqs_ref, x_ref, o_ref, *, rep):
    """One row-tile of RoPE.

    seqlen_ref: (batch+1,) int32 SMEM (scalar prefetch) — cu_seqlens.
    freqs_ref:  (1, Wc) f32 — sign-folded per-lane frequencies (Wc = W // rep).
    x_ref:      (tile_m, W) input rows (heads folded into lanes).
    o_ref:      (tile_m, W) output rows.
    """
    tile_m, w = x_ref.shape

    # ---- per-token position within its sequence, from cu_seqlens in SMEM ----
    row = jax.lax.broadcasted_iota(jnp.int32, (tile_m, 1), 0)
    tok = pl.program_id(0) * tile_m + row                      # (tm, 1) global token id
    nseq = seqlen_ref.shape[0]
    start = jnp.zeros((tile_m, 1), jnp.int32)
    if nseq <= 32:
        # static unroll: a couple of VALU ops per sequence boundary per 8-row slab
        for j in range(nseq):
            s = seqlen_ref[j]
            start = jnp.where(tok >= s, s, start)
    else:
        def body(j, carry):
            s = seqlen_ref[j]
            return jnp.where(tok >= s, s, carry)
        start = jax.lax.fori_loop(0, nseq, body, start)
    pos = (tok - start).astype(jnp.float32)                    # (tm, 1)

    # ---- transcendentals on only Wc lanes, then whole-vreg lane replication ----
    theta = pos * freqs_ref[...]                               # (tm, Wc), sign folded in
    cos = jnp.cos(theta)                                       # == cos(|theta|)
    sin = jnp.sin(theta)                                       # == sign * sin(|theta|)
    if rep > 1:
        cos = jnp.concatenate([cos] * rep, axis=-1)            # (tm, W), vreg copies
        sin = jnp.concatenate([sin] * rep, axis=-1)

    # ---- unsigned interleaved pair swap: y[2k] = x[2k+1], y[2k+1] = x[2k] ----
    # Two XLU lane rotations + even/odd select.  Head boundaries (and the wrapped
    # W boundary) are safe because c and W are even, so wrapped-in lanes are never
    # selected.
    x = x_ref[...].astype(jnp.float32)                         # f32 compute (no bf16 VPU on v5e)
    sh_r = pltpu.roll(x, shift=1, axis=1)                      # sh_r[l] = x[l-1]
    sh_l = pltpu.roll(x, shift=w - 1, axis=1)                  # sh_l[l] = x[l+1]
    lane = jax.lax.broadcasted_iota(jnp.int32, (1, w), 1)
    is_even = (lane & 1) == 0
    x_swap = jnp.where(is_even, sh_l, sh_r)

    o_ref[...] = (x * cos + x_swap * sin).astype(o_ref.dtype)


def rope_unpadded(x, seqlen, max_seqlen, *, scale=10000.0, tile_m=None):
    """Pallas equivalent of RoPEUnpadded.forward.

    x:          (total, h, c)
    seqlen:     (batch+1,) int32 cumulative sequence lengths (cu_seqlens)
    max_seqlen: int (only sized the freqs cache in the torch module; unused here)
    """
    del max_seqlen
    total, h, c = x.shape
    assert c % 2 == 0, "head_dim must be even for RoPE pair rotation"
    W = h * c
    M = total
    seqlen = seqlen.astype(jnp.int32)

    # ---- transcendental compute width Wc and lane-replication factor rep ----
    # rep > 1 only when Wc is a whole number of 128-lane vregs (clean replication).
    if c % 128 == 0:
        Wc, rep = c, h
    elif (128 % c == 0) and (W % 128 == 0):
        Wc, rep = 128, W // 128
    else:
        Wc, rep = W, 1          # fallback: no dedup, masked partial stores if W%128!=0

    # ---- sign-folded per-lane frequencies (static; one tiny resident input) ----
    d = np.arange(Wc) % c
    freq = 1.0 / scale ** ((2.0 * (d // 2)) / c)
    sign = np.where(d % 2 == 0, -1.0, 1.0)
    freqs_row = jnp.asarray((sign * freq)[None, :], dtype=jnp.float32)      # (1, Wc)

    # ---- fold heads into the lane axis (free view, x is contiguous) ----
    x2d = x.reshape(M, W)

    # ---- generation-aware tile size: largest sublane-aligned block in budget ----
    itemsize = jnp.dtype(x.dtype).itemsize
    min_rows = {4: 8, 2: 16, 1: 32}.get(itemsize, 8)    # sublane packing per dtype
    try:
        vmem_cap = pltpu.get_tpu_info().vmem_capacity_bytes
    except Exception:
        vmem_cap = 64 * 1024 * 1024                     # v7x-safe fallback
    if tile_m is None:
        budget = vmem_cap // 3
        # in + out double-buffered plus ~6 f32-wide live elementwise temps per row.
        per_row = W * (4 * itemsize + 6 * 4)
        tile_m = max(min_rows, (budget // per_row) // min_rows * min_rows)
        tile_m = min(tile_m, 32768)
    tile_m = min(tile_m, pl.cdiv(M, min_rows) * min_rows)   # don't exceed the input
    tile_m = max(min_rows, tile_m)
    vmem_limit = int(min(vmem_cap * 3 // 4, 128 * 1024 * 1024))

    grid = (pl.cdiv(M, tile_m),)      # ragged tail handled by masked boundary writes
    out2d = pl.pallas_call(
        partial(_rope_kernel, rep=rep),
        out_shape=jax.ShapeDtypeStruct((M, W), x.dtype),
        grid_spec=pltpu.PrefetchScalarGridSpec(
            num_scalar_prefetch=1,                              # cu_seqlens -> SMEM
            grid=grid,
            in_specs=[
                pl.BlockSpec((1, Wc), lambda i, sl: (0, 0)),        # freqs (resident)
                pl.BlockSpec((tile_m, W), lambda i, sl: (i, 0)),    # x rows (lane-dense)
            ],
            out_specs=pl.BlockSpec((tile_m, W), lambda i, sl: (i, 0)),
        ),
        compiler_params=pltpu.CompilerParams(
            dimension_semantics=("parallel",),
            vmem_limit_bytes=vmem_limit,
        ),
    )(seqlen, freqs_row, x2d)

    return out2d.reshape(total, h, c)


def rope_unpadded_ref(x, seqlen, max_seqlen, scale=10000.0):
    """Pure-JAX reference matching the PyTorch forward exactly."""
    del max_seqlen
    total, h, c = x.shape
    freqs_core = 1.0 / scale ** (jnp.arange(0, c, 2, dtype=jnp.float32) / c)
    tok = jnp.arange(total, dtype=jnp.int32)
    batch_id = jnp.searchsorted(seqlen, tok, side="right") - 1
    pos = (tok - jnp.take(seqlen, batch_id)).astype(jnp.float32)
    freqs = pos[:, None] * freqs_core[None, :]                  # (total, c/2)
    freqs = jnp.repeat(freqs, 2, axis=-1)[:, None, :]           # (total, 1, c)
    cos, sin = jnp.cos(freqs), jnp.sin(freqs)
    x1 = x[..., 0::2]
    x2 = x[..., 1::2]
    x_rot = jnp.stack([-x2, x1], axis=-1).reshape(x.shape)
    return (x * cos + x_rot * sin).astype(x.dtype)


def _make_case(key, lens, heads, head_dim, dtype):
    lens = jnp.asarray(lens, dtype=jnp.int32)
    seqlen = jnp.concatenate(
        [jnp.zeros((1,), jnp.int32), jnp.cumsum(lens)]).astype(jnp.int32)
    total = int(seqlen[-1])
    max_seqlen = int(jnp.max(lens))
    x = jax.random.normal(key, (total, heads, head_dim), dtype=jnp.float32)
    return x.astype(dtype), seqlen, max_seqlen


if __name__ == "__main__":
    key = jax.random.PRNGKey(0)
    k1, k2, k3, k4 = jax.random.split(key, 4)

    cases = [
        # (key, lens,      h, c,   dtype,        atol)  — all small shapes
        (k1, [5, 3],       4, 32,  jnp.float32,  1e-4),   # W=128, rep=1 (lane-dense)
        (k2, [7, 6, 4],    8, 32,  jnp.bfloat16, 5e-2),   # W=256, Wc=128, rep=2 (dedup, bf16)
        (k3, [6, 2],       2, 128, jnp.float32,  1e-4),   # c=128 branch, rep=2
        (k4, [9, 14],      3, 32,  jnp.float32,  1e-4),   # W=96 fallback (masked stores)
    ]
    for key_i, lens, heads, head_dim, dtype, atol in cases:
        x, seqlen, max_seqlen = _make_case(key_i, lens, heads, head_dim, dtype)
        out = jax.block_until_ready(rope_unpadded(x, seqlen, max_seqlen))
        ref = rope_unpadded_ref(x, seqlen, max_seqlen)
        assert out.shape == x.shape and out.dtype == x.dtype
        err = float(jnp.max(jnp.abs(out.astype(jnp.float32) - ref.astype(jnp.float32))))
        assert err <= atol, (
            f"case h={heads} c={head_dim} dtype={dtype}: max err {err}")

    print("KERNEL_OK")
</pallas_src>

<mosaic_0001>
module attributes {stable_mosaic.version = 11 : i64} {
  func.func @_rope_kernel(%arg0: i32, %arg1: memref<3xi32, #tpu.memory_space<smem>>, %arg2: memref<1x128xf32, #tpu.memory_space<vmem>>, %arg3: memref<8x128xf32, #tpu.memory_space<vmem>>, %arg4: memref<8x128xf32, #tpu.memory_space<vmem>>) attributes {dimension_semantics = [#tpu.dimension_semantics<parallel>], iteration_bounds = array<i64: 1>, scalar_prefetch = 1 : i64, scratch_operands = 0 : i64, tpu.core_type = #tpu.core_type<tc>, window_params = [{pipeline_mode = #tpu.pipeline_mode<synchronous>, transform_indices = @transform_0, window_bounds = array<i64: 1, 128>}, {transform_indices = @transform_1, window_bounds = array<i64: 8, 128>}, {transform_indices = @transform_2, window_bounds = array<i64: 8, 128>}]} {
    %0 = tpu.iota {dimensions = array<i32: 0>} : vector<8x1xi32>
    %c8_i32 = arith.constant 8 : i32
    %1 = arith.muli %arg0, %c8_i32 : i32
    %2 = vector.broadcast %1 : i32 to vector<8x1xi32>
    %3 = arith.addi %2, %0 : vector<8x1xi32>
    %c0_i32 = arith.constant 0 : i32
    %4 = vector.broadcast %c0_i32 : i32 to vector<8x1xi32>
    %c0 = arith.constant 0 : index
    %5 = memref.load %arg1[%c0] : memref<3xi32, #tpu.memory_space<smem>>
    %6 = vector.broadcast %5 : i32 to vector<8x1xi32>
    %7 = arith.cmpi sge, %3, %6 : vector<8x1xi32>
    %8 = vector.broadcast %5 : i32 to vector<8x1xi32>
    %9 = arith.select %7, %8, %4 : vector<8x1xi1>, vector<8x1xi32>
    %c1 = arith.constant 1 : index
    %10 = memref.load %arg1[%c1] : memref<3xi32, #tpu.memory_space<smem>>
    %11 = vector.broadcast %10 : i32 to vector<8x1xi32>
    %12 = arith.cmpi sge, %3, %11 : vector<8x1xi32>
    %13 = vector.broadcast %10 : i32 to vector<8x1xi32>
    %14 = arith.select %12, %13, %9 : vector<8x1xi1>, vector<8x1xi32>
    %c2 = arith.constant 2 : index
    %15 = memref.load %arg1[%c2] : memref<3xi32, #tpu.memory_space<smem>>
    %16 = vector.broadcast %15 : i32 to vector<8x1xi32>
    %17 = arith.cmpi sge, %3, %16 : vector<8x1xi32>
    %18 = vector.broadcast %15 : i32 to vector<8x1xi32>
    %19 = arith.select %17, %18, %14 : vector<8x1xi1>, vector<8x1xi32>
    %20 = arith.subi %3, %19 : vector<8x1xi32>
    %21 = arith.sitofp %20 : vector<8x1xi32> to vector<8x1xf32>
    %c0_0 = arith.constant 0 : index
    %c0_1 = arith.constant 0 : index
    %22 = vector.load %arg2[%c0_0, %c0_1] : memref<1x128xf32, #tpu.memory_space<vmem>>, vector<1x128xf32>
    %23 = vector.broadcast %21 : vector<8x1xf32> to vector<8x128xf32>
    %24 = vector.broadcast %22 : vector<1x128xf32> to vector<8x128xf32>
    %25 = arith.mulf %23, %24 : vector<8x128xf32>
    %26 = math.cos %25 : vector<8x128xf32>
    %27 = math.sin %25 : vector<8x128xf32>
    %c0_2 = arith.constant 0 : index
    %c0_3 = arith.constant 0 : index
    %28 = vector.load %arg3[%c0_2, %c0_3] : memref<8x128xf32, #tpu.memory_space<vmem>>, vector<8x128xf32>
    %c1_i32 = arith.constant 1 : i32
    %29 = tpu.dynamic_rotate %28 by %c1_i32 dim 1 : vector<8x128xf32>, i32 -> vector<8x128xf32>
    %c127_i32 = arith.constant 127 : i32
    %30 = tpu.dynamic_rotate %28 by %c127_i32 dim 1 : vector<8x128xf32>, i32 -> vector<8x128xf32>
    %31 = tpu.iota {dimensions = array<i32: 1>} : vector<1x128xi32>
    %c1_i32_4 = arith.constant 1 : i32
    %32 = vector.broadcast %c1_i32_4 : i32 to vector<1x128xi32>
    %33 = arith.andi %31, %32 : vector<1x128xi32>
    %c0_i32_5 = arith.constant 0 : i32
    %34 = vector.broadcast %c0_i32_5 : i32 to vector<1x128xi32>
    %35 = arith.cmpi eq, %33, %34 : vector<1x128xi32>
    %36 = vector.shape_cast %35 : vector<1x128xi1> to vector<1x128xi1>
    %37 = vector.broadcast %36 : vector<1x128xi1> to vector<8x128xi1>
    %38 = arith.select %37, %30, %29 : vector<8x128xi1>, vector<8x128xf32>
    %39 = arith.mulf %28, %26 : vector<8x128xf32>
    %40 = arith.mulf %38, %27 : vector<8x128xf32>
    %41 = arith.addf %39, %40 : vector<8x128xf32>
    %c0_6 = arith.constant 0 : index
    %c0_7 = arith.constant 0 : index
    %42 = vector.load %arg4[%c0_6, %c0_7] : memref<8x128xf32, #tpu.memory_space<vmem>>, vector<8x128xf32>
    tpu.vector_store %arg4[%c0_6, %c0_7], %41 {strides = array<i32>} : memref<8x128xf32, #tpu.memory_space<vmem>>, vector<8x128xf32>,
    return
  }
  func.func @transform_0(%arg0: i32, %arg1: memref<3xi32, #tpu.memory_space<smem>>) -> (i32, i32) {
    %c0_i32 = arith.constant 0 : i32
    %c0_i32_0 = arith.constant 0 : i32
    %c0_i32_1 = arith.constant 0 : i32
    return %c0_i32, %c0_i32_0 : i32, i32
  }
  func.func @transform_1(%arg0: i32, %arg1: memref<3xi32, #tpu.memory_space<smem>>) -> (i32, i32) {
    %c0_i32 = arith.constant 0 : i32
    %c0_i32_0 = arith.constant 0 : i32
    return %arg0, %c0_i32 : i32, i32
  }
  func.func @transform_2(%arg0: i32, %arg1: memref<3xi32, #tpu.memory_space<smem>>) -> (i32, i32) {
    %c0_i32 = arith.constant 0 : i32
    %c0_i32_0 = arith.constant 0 : i32
    return %arg0, %c0_i32 : i32, i32
  }
}

</mosaic_0001>

<llo_original>
// kernel: tpu_custom_call.1
$region0: #{tpu_custom_call.1}
  #allocation0 [shape = 'u32[]', space=smem, size = 0x4, offset = 0x4, fixed_abs, tag = 'smem constant byte address 0x4 - core index']
  #allocation1 [shape = 'u32[144,128]{1,0:T(1,128)}', space=vmem, size = 0x12000, scoped, tag = 'internal scratch']
  #allocation2 [shape = 's32[1]{0}', space=sflag, size = 0x4, scoped, tag = 'scoped memory for tpu_custom_call.1']
  #allocation3 [shape = 'u8[512]{0}', space=smem, size = 0x200, scoped, tag = 'prefetched SMEM operand 0']
  %s0 = inlined_call_operand.hbm [shape: s32[3], index: 0, kind: input, shape index: {}]
  %s1 = inlined_call_operand.vmem [shape: f32[1,128], index: 1, kind: input, shape index: {}]
  %s2 = inlined_call_operand.hbm [shape: f32[8,128], index: 2, kind: input, shape index: {}]
  %s3 = inlined_call_operand.hbm [shape: f32[8,128], index: 3, kind: output, shape index: {}]
  %s4 = sld [smem:[#allocation0]]
  $region22: #{tpu_custom_call.1} parent=0
    _
  %s6 = ssub.s32 1, %s4
  %s7 = scalar_select 0, %s6, %s4
  %9 = dma.hbm_to_smem %s0, 16, [#allocation3], [#allocation2]
  %10 = dma.done [#allocation2], 16
  %11 = sfence
  $region1: #{tpu_custom_call.1} parent=0
    #allocation4 [shape = 'u8[4096]{0}', space=vmem, size = 0x1000, scoped, tag = 'input window, operand 2, single buffered']
    #allocation5 [shape = 's32[1]{0}', space=sflag, size = 0x4, scoped, tag = 'scoped memory for tpu_custom_call.1']
    #allocation6 [shape = 's32[1]{0}', space=sflag, size = 0x4, scoped, tag = 'scoped memory for tpu_custom_call.1']
    #allocation7 [shape = 'u8[4096]{0}', space=vmem, size = 0x1000, scoped, tag = 'output window, operand 0, single buffered']
    %12 = vsyncpa [#allocation5], 0
    %13 = vsyncpa [#allocation6], 0
    // Predicated region
    $region2: #{tpu_custom_call.1} parent=1 // pred_check
      _
    $region3: #{tpu_custom_call.1} parent=1 // pred_check_branch
      %15 = sbr.rel (0) target = $region5
    $region4: #{tpu_custom_call.1} parent=1 // pred_region
      _
    $region5: #{tpu_custom_call.1} parent=1 // pred_fallthru
      _
    // Predicated region
    $region6: #{tpu_custom_call.1} parent=1 // pred_check
      _
    $region7: #{tpu_custom_call.1} parent=1 // pred_check_branch
      %17 = sbr.rel (0) target = $region9
    $region8: #{tpu_custom_call.1} parent=1 // pred_region
      %s19 = ssub.s32 128, 128
      %20 = vsyncadd [#allocation5], %s19
      %s22 = sshll.u32 [#allocation4], 4
      %s23 = int_to_ptr.vmem [resolvable:$true] %s22
      %25 = dma.hbm_to_vmem [thread:$0]  %s2, 128, %s23, [#allocation5]
    $region9: #{tpu_custom_call.1} parent=1 // pred_fallthru
      _
    // Predicated region
    $region10: #{tpu_custom_call.1} parent=1 // pred_check
      _
    $region11: #{tpu_custom_call.1} parent=1 // pred_check_branch
      %27 = sbr.rel (0) target = $region13
    $region12: #{tpu_custom_call.1} parent=1 // pred_region
      %28 = dma.done [#allocation5], 128
    $region13: #{tpu_custom_call.1} parent=1 // pred_fallthru
      _
    %v29 = vlaneseq
    %v30 = vshrl.u32 %v29, 7
    %s31 = smul.u32 0, 8
    %v32 = vstv %s31
    %v33 = vadd.s32 %v32, %v30
    %s34 = sld [smem:[#allocation3]]
    %v35 = vstv %s34
    %vm36 = vcmp.ge.s32.totalorder %v33, %v35
    %v37 = vsel %vm36, %v35, 0
    %s38 = sld [smem:[#allocation3 + $0x1]]
    %v39 = vstv %s38
    %vm40 = vcmp.ge.s32.totalorder %v33, %v39
    %v41 = vsel %vm40, %v39, %v37
    %s42 = sld [smem:[#allocation3 + $0x2]]
    %v43 = vstv %s42
    %vm44 = vcmp.ge.s32.totalorder %v33, %v43
    %v45 = vsel %vm44, %v43, %v41
    %v46 = vsub.s32 %v33, %v45
    %v47 = vcvt.s32.f32 %v46
    %v48 = vld [vmem:[%s1] sm:$0x1]
    %v50 = vlaneseq
    %v51 = vshrl.u32 %v50, 7
    %v52 = vsub.s32 0, %v51
    %v53 = vrot.slane %v48, %v52
    %v55 = vmul.f32 %v47, %v53
    %v56 = vand.u32 2147483647, %v55
    %vm57 = vcmp.le.f32.partialorder %v56, 0.7853982
    %vm58 = vcmp.lt.s32.totalorder %v55, 0
    %v59 = vand.u32 %v55, 2139095040
    %v60 = vshrl.u32 %v59, 23
    %v61 = vsub.s32 %v60, 127
    %v62 = vand.u32 2147483647, %v55
    %v63 = vand.u32 %v62, 8388607
    %v64 = vor.u32 %v63, 8388608
    %v65 = vsub.s32 0, %v64
    %v66 = vadd.s32 %v61, 1
    %vm67 = vcmp.gt.s32.totalorder %v66, 0
    %v68 = vsel %vm67, %v66, 0
    %v69 = vshrl.u32 %v68, 5
    %v70 = vand.u32 %v68, 31
    %v71 = vsub.s32 32, %v70
    %v72 = vshrl.u32 683565275, %v71
    %v73 = vshll.u32 683565275, %v70
    %v74 = vshrl.u32 2475754826, %v71
    %v75 = vor.u32 %v73, %v74
    %v76 = vshll.u32 2475754826, %v70
    %v77 = vshrl.u32 2131351028, %v71
    %v78 = vor.u32 %v76, %v77
    %v79 = vshll.u32 2131351028, %v70
    %v80 = vshrl.u32 2102212464, %v71
    %v81 = vor.u32 %v79, %v80
    %v82 = vshll.u32 2102212464, %v70
    %v83 = vshrl.u32 920167782, %v71
    %v84 = vor.u32 %v82, %v83
    %v85 = vshll.u32 920167782, %v70
    %v86 = vshrl.u32 1326507024, %v71
    %v87 = vor.u32 %v85, %v86
    %vm88 = vcmp.lt.s32.totalorder %v69, 1
    %vm89 = vcmp.lt.s32.totalorder %v69, 2
    %vm90 = vcmp.lt.s32.totalorder %v69, 3
    %vm91 = vcmp.lt.s32.totalorder %v69, 4
    %v92 = vsel %vm88, %v72, %v75
    %v93 = vsel %vm91, %v81, 2102212464
    %v94 = vsel %vm90, %v78, %v93
    %v95 = vsel %vm89, %v92, %v94
    %v96 = vsel %vm88, %v75, %v78
    %v97 = vsel %vm91, %v84, 920167782
    %v98 = vsel %vm90, %v81, %v97
    %v99 = vsel %vm89, %v96, %v98
    %v100 = vsel %vm88, %v78, %v81
    %v101 = vsel %vm91, %v87, 1326507024
    %v102 = vsel %vm90, %v84, %v101
    %v103 = vsel %vm89, %v100, %v102
    %v104 = vshll.u32 %v64, 8
    %v105 = vmul.u32.u64.compose %v104, %v103
    %v106 = vextract.low.u32 %v105
    %v107 = vextract.high.u32 %v105
    %v108 = vmul.u32.u64.compose %v104, %v99
    %v109 = vextract.low.u32 %v108
    %v110 = vextract.high.u32 %v108
    %v111 = vmul.u32 %v104, %v95
    %v112 = vadd.s32 %v107, %v109
    %vm113 = vc.u32 %v107, %v109
    %v114 = vadd.s32 %v110, 1
    %v115 = vsel %vm113, %v114, %v110
    %v116 = vadd.s32 %v111, %v115
    %v117 = vadd.s32 %v116, 536870912
    %v118 = vshrl.u32 %v117, 30
    %v119 = vshll.u32 %v118, 30
    %v120 = vsub.s32 %v116, %v119
    %vm121 = vcmp.lt.s32.totalorder %v120, 0
    %v122 = vsub.s32 0, %v120
    %v123 = vsel %vm121, %v122, %v120
    %v124 = vclz %v123
    %v125 = vsub.s32 %v124, 2
    %vm126 = vcmp.gt.s32.totalorder 0, %v125
    %v127 = vsel %vm126, 0, %v125
    %v128 = vsub.s32 32, %v127
    %v129 = vshll.u32 %v120, %v127
    %v130 = vshrl.u32 %v112, %v128
    %v131 = vor.u32 %v129, %v130
    %v132 = vsub.s32 4294967266, %v127
    %v133 = vadd.s32 %v132, 127
    %v134 = vshll.u32 %v133, 23
    %v135 = vor.u32 4788187, %v134
    %v136 = vand.u32 2147483647, %v135
    %v138 = vcvt.s32.f32 %v131
    %v139 = vmul.f32 %v138, %v136
    %v140 = vxor.u32 %v139, 2147483648
    %v141 = vsel %vm58, %v140, %v139
    %v142 = vsub.s32 4, %v118
    %v143 = vsel %vm58, %v142, %v118
    %v144 = vsel %vm57, %v55, %v141
    %v145 = vsel %vm57, 0, %v143
    %v146 = vcosq.f32.pop %v144
    %v147 = vsinq.f32.pop %v144
    %vm148 = vweird.f32 %v55
    %v149 = vand.u32 %v145, 3
    %vm150 = vcmp.lt.s32.totalorder %v149, 2
    %vm151 = vcmp.eq.s32.totalorder %v149, 0
    %v152 = vxor.u32 %v147, 2147483648
    %v153 = vsel %vm151, %v146, %v152
    %vm154 = vcmp.eq.s32.totalorder %v149, 2
    %v155 = vxor.u32 %v146, 2147483648
    %v156 = vsel %vm154, %v155, %v147
    %v157 = vsel %vm150, %v153, %v156
    %v158 = vsel %vm148, nan, %v157
    %v159 = vand.u32 2147483647, %v55
    %vm160 = vcmp.le.f32.partialorder %v159, 0.7853982
    %vm161 = vcmp.lt.s32.totalorder %v55, 0
    %v162 = vand.u32 %v55, 2139095040
    %v163 = vshrl.u32 %v162, 23
    %v164 = vsub.s32 %v163, 127
    %v165 = vand.u32 2147483647, %v55
    %v166 = vand.u32 %v165, 8388607
    %v167 = vor.u32 %v166, 8388608
    %v168 = vsub.s32 0, %v167
    %v169 = vadd.s32 %v164, 1
    %vm170 = vcmp.gt.s32.totalorder %v169, 0
    %v171 = vsel %vm170, %v169, 0
    %v172 = vshrl.u32 %v171, 5
    %v173 = vand.u32 %v171, 31
    %v174 = vsub.s32 32, %v173
    %v175 = vshrl.u32 683565275, %v174
    %v176 = vshll.u32 683565275, %v173
    %v177 = vshrl.u32 2475754826, %v174
    %v178 = vor.u32 %v176, %v177
    %v179 = vshll.u32 2475754826, %v173
    %v180 = vshrl.u32 2131351028, %v174
    %v181 = vor.u32 %v179, %v180
    %v182 = vshll.u32 2131351028, %v173
    %v183 = vshrl.u32 2102212464, %v174
    %v184 = vor.u32 %v182, %v183
    %v185 = vshll.u32 2102212464, %v173
    %v186 = vshrl.u32 920167782, %v174
    %v187 = vor.u32 %v185, %v186
    %v188 = vshll.u32 920167782, %v173
    %v189 = vshrl.u32 1326507024, %v174
    %v190 = vor.u32 %v188, %v189
    %vm191 = vcmp.lt.s32.totalorder %v172, 1
    %vm192 = vcmp.lt.s32.totalorder %v172, 2
    %vm193 = vcmp.lt.s32.totalorder %v172, 3
    %vm194 = vcmp.lt.s32.totalorder %v172, 4
    %v195 = vsel %vm191, %v175, %v178
    %v196 = vsel %vm194, %v184, 2102212464
    %v197 = vsel %vm193, %v181, %v196
    %v198 = vsel %vm192, %v195, %v197
    %v199 = vsel %vm191, %v178, %v181
    %v200 = vsel %vm194, %v187, 920167782
    %v201 = vsel %vm193, %v184, %v200
    %v202 = vsel %vm192, %v199, %v201
    %v203 = vsel %vm191, %v181, %v184
    %v204 = vsel %vm194, %v190, 1326507024
    %v205 = vsel %vm193, %v187, %v204
    %v206 = vsel %vm192, %v203, %v205
    %v207 = vshll.u32 %v167, 8
    %v208 = vmul.u32.u64.compose %v207, %v206
    %v209 = vextract.low.u32 %v208
    %v210 = vextract.high.u32 %v208
    %v211 = vmul.u32.u64.compose %v207, %v202
    %v212 = vextract.low.u32 %v211
    %v213 = vextract.high.u32 %v211
    %v214 = vmul.u32 %v207, %v198
    %v215 = vadd.s32 %v210, %v212
    %vm216 = vc.u32 %v210, %v212
    %v217 = vadd.s32 %v213, 1
    %v218 = vsel %vm216, %v217, %v213
    %v219 = vadd.s32 %v214, %v218
    %v220 = vadd.s32 %v219, 536870912
    %v221 = vshrl.u32 %v220, 30
    %v222 = vshll.u32 %v221, 30
    %v223 = vsub.s32 %v219, %v222
    %vm224 = vcmp.lt.s32.totalorder %v223, 0
    %v225 = vsub.s32 0, %v223
    %v226 = vsel %vm224, %v225, %v223
    %v227 = vclz %v226
    %v228 = vsub.s32 %v227, 2
    %vm229 = vcmp.gt.s32.totalorder 0, %v228
    %v230 = vsel %vm229, 0, %v228
    %v231 = vsub.s32 32, %v230
    %v232 = vshll.u32 %v223, %v230
    %v233 = vshrl.u32 %v215, %v231
    %v234 = vor.u32 %v232, %v233
    %v235 = vsub.s32 4294967266, %v230
    %v236 = vadd.s32 %v235, 127
    %v237 = vshll.u32 %v236, 23
    %v238 = vor.u32 4788187, %v237
    %v239 = vand.u32 2147483647, %v238
    %v241 = vcvt.s32.f32 %v234
    %v242 = vmul.f32 %v241, %v239
    %v243 = vxor.u32 %v242, 2147483648
    %v244 = vsel %vm161, %v243, %v242
    %v245 = vsub.s32 4, %v221
    %v246 = vsel %vm161, %v245, %v221
    %v247 = vsel %vm160, %v55, %v244
    %v248 = vsel %vm160, 0, %v246
    %v249 = vcosq.f32.pop %v247
    %v250 = vsinq.f32.pop %v247
    %vm251 = vweird.f32 %v55
    %v252 = vadd.s32 %v248, 3
    %v253 = vand.u32 %v252, 3
    %vm254 = vcmp.lt.s32.totalorder %v253, 2
    %vm255 = vcmp.eq.s32.totalorder %v253, 0
    %v256 = vxor.u32 %v250, 2147483648
    %v257 = vsel %vm255, %v249, %v256
    %vm258 = vcmp.eq.s32.totalorder %v253, 2
    %v259 = vxor.u32 %v249, 2147483648
    %v260 = vsel %vm258, %v259, %v250
    %v261 = vsel %vm254, %v257, %v260
    %v262 = vsel %vm251, nan, %v261
    %v263 = vld [vmem:[#allocation4] sm:$0xff]
    %264 = vrot.lane.b32.xlu0 %v263, 1
    %v265 = vpop.permute.xlu0 %264
    %266 = vrot.lane.b32.xlu0 %v263, 127
    %v267 = vpop.permute.xlu0 %266
    %v268 = vlaneseq
    %v269 = vand.u32 %v268, 127
    %v270 = vand.u32 %v269, 1
    %vm271 = vcmp.eq.s32.totalorder %v270, 0
    %v272 = vsel %vm271, 1, 0
    %vm273 = vcmp.eq.s32.totalorder %v272, 1
    %v274 = vsel %vm273, %v267, %v265
    %v275 = vmul.f32 %v263, %v158
    %v276 = vmul.f32 %v274, %v262
    %v277 = vadd.f32 %v275, %v276
    %278 = vst [vmem:[#allocation7] sm:$0xff] %v277
    // Predicated region
    $region14: #{tpu_custom_call.1} parent=1 // pred_check
      _
    $region15: #{tpu_custom_call.1} parent=1 // pred_check_branch
      %280 = sbr.rel (0) target = $region17
    $region16: #{tpu_custom_call.1} parent=1 // pred_region
      %s282 = ssub.s32 128, 128
      %283 = vsyncadd [#allocation6], %s282
      %s285 = sshll.u32 [#allocation7], 4
      %s286 = int_to_ptr.vmem [resolvable:$true] %s285
      %288 = dma.vmem_to_hbm [thread:$0]  %s286, 128, %s3, [#allocation6]
    $region17: #{tpu_custom_call.1} parent=1 // pred_fallthru
      _
    // Predicated region
    $region18: #{tpu_custom_call.1} parent=1 // pred_check
      _
    $region19: #{tpu_custom_call.1} parent=1 // pred_check_branch
      %290 = sbr.rel (0) target = $region21
    $region20: #{tpu_custom_call.1} parent=1 // pred_region
      %291 = dma.done [#allocation6], 128
    $region21: #{tpu_custom_call.1} parent=1 // pred_fallthru
      _
    %292 = vsyncpa [#allocation5], 1
    %293 = vsyncpa [#allocation6], 1

</llo_original>
